<compile_context>
chip_gen: v7x
topology: tpu7x:2x2x1
jax: 0.10.0
libtpu: 0.0.40
codegen_flags: <defaults>
</compile_context>

<pallas_src>
import jax
import jax.numpy as jnp
import numpy as np
from jax import lax
from jax.experimental import pallas as pl
from jax.experimental.pallas import tpu as pltpu

KH = KW = 5
PAD = 2


def _resblock_kernel(x_ref, w1_ref, b1_ref, w2_ref, b2_ref, o_ref,
                     xpad_ref, h1pad_ref):
    # x_ref    : (Nb, H, W*C)        f32   lane-dense input slabs (also residual)
    # w1_ref   : (KH*W*C, W*C)       bf16  K-fused Toeplitz weights, conv1
    # b1_ref   : (1, W*C)            f32   lane-tiled bias, conv1
    # w2_ref   : (KH*W*C, W*C)       bf16  K-fused Toeplitz weights, conv2
    # b2_ref   : (1, W*C)            f32
    # o_ref    : (Nb, H, W*C)        f32   lane-dense output slabs
    # xpad_ref : (Nb, H+4, W*C)      bf16  scratch: row-padded conv1 input
    # h1pad_ref: (Nb, H+4, W*C)      bf16  scratch: row-padded conv1 output
    nb, H, WC = o_ref.shape

    # Re-zero only the 2-row top/bottom halos (interior rows are fully
    # overwritten below).  Kept per-step so it stays correct under any megacore
    # partition of the batch grid axis; cost is 4*Nb tiny (2, 128) stores,
    # negligible next to the two fat matmuls.
    zhalo = jnp.zeros((nb, PAD, WC), jnp.bfloat16)
    xpad_ref[:, :PAD, :] = zhalo
    xpad_ref[:, PAD + H:, :] = zhalo
    h1pad_ref[:, :PAD, :] = zhalo
    h1pad_ref[:, PAD + H:, :] = zhalo

    x = x_ref[...]                                     # (Nb, H, WC) f32 residual
    xpad_ref[:, PAD:PAD + H, :] = x.astype(jnp.bfloat16)

    def conv(pad_ref, w_ref, b_ref):
        # K-fused tap matmul: concat the 5 y-shifted slabs along the
        # contraction dim -> one (Nb*H, KH*WC) @ (KH*WC, WC) MXU matmul with
        # f32 accumulation inside the MXU.
        # TODO(synk): if the bundle dump shows the shifted slices lowering to
        # sublane-relayout copies (bf16 packs 16 rows/vreg), move the shift to
        # pltpu.roll on a register-resident block instead of re-slicing VMEM.
        lhs = jnp.concatenate(
            [pad_ref[:, dy:dy + H, :].reshape(nb * H, WC) for dy in range(KH)],
            axis=-1)                                   # (Nb*H, KH*WC) bf16
        acc = jnp.dot(lhs, w_ref[...], preferred_element_type=jnp.float32)
        return jnp.maximum(acc + b_ref[...], 0.0).reshape(nb, H, WC)

    h1 = conv(xpad_ref, w1_ref, b1_ref)                # conv1 + bias + ReLU
    h1pad_ref[:, PAD:PAD + H, :] = h1.astype(jnp.bfloat16)
    h2 = conv(h1pad_ref, w2_ref, b2_ref)               # conv2 + bias + ReLU

    # residual add + final ReLU, fully lane-dense unmasked store
    o_ref[...] = jnp.maximum(h2 + x, 0.0).astype(o_ref.dtype)


def _toeplitz_weight(w_oihw, width, dtype=jnp.bfloat16):
    """(Cout, Cin, KH, KW) PyTorch weights -> (KH*width*Cin, width*Cout).

    toe[dy*W*Cin + p*Cin + ci, q*Cout + co] = w[co, ci, dy, p - q + PAD] when
    the x-tap is in range, else 0 — x-direction SAME padding is folded into the
    structural zeros, and the KH taps are stacked along the contraction dim so
    each conv becomes a single fat matmul.
    """
    cout, cin, kh, kw = w_oihw.shape
    wt = jnp.transpose(w_oihw, (2, 3, 1, 0))                 # (KH, KW, Cin, Cout)
    p = jnp.arange(width)[:, None]                           # input column
    q = jnp.arange(width)[None, :]                           # output column
    dx = p - q + PAD                                         # (W, W)
    valid = (dx >= 0) & (dx < kw)
    blocks = wt[:, jnp.clip(dx, 0, kw - 1)]                  # (KH, W, W, Cin, Cout)
    blocks = blocks * valid[None, :, :, None, None].astype(wt.dtype)
    toe = jnp.transpose(blocks, (0, 1, 3, 2, 4))             # (KH, W, Cin, W, Cout)
    return toe.reshape(kh * width * cin, width * cout).astype(dtype)


def _pick_batch_block(n, h):
    """Smallest divisor of n giving nb*h >= 128 MXU rows; else all of n."""
    for cand in range(1, n + 1):
        if n % cand == 0 and cand * h >= 128:
            return cand
    return n


def conv2d_resblock(x_nchw, w1, b1, w2, b2, *, batch_block=None):
    """x_nchw: (N, C, H, W); w*: (Cout, Cin, 5, 5) PyTorch layout; b*: (Cout,)."""
    N, C, H, W = x_nchw.shape
    Cout = w1.shape[0]
    assert C == Cout, "residual add requires in_channel == out_channel"
    WC = W * C
    assert WC % 128 == 0, "lane-dense layout requires W*C to be a multiple of 128"
    # TODO(synk): the Toeplitz weight is KH*(W*C)^2 bf16 (quadratic in W*C); for
    # W*C beyond ~512-1024 add a lane-tile grid axis over output columns and
    # ship only the non-zero band (and/or pipeline_mode=pl.Buffered(1) on the
    # constant-index weight specs) before scaling H/W/C, esp. on v7x (64 MiB).
    Nb = batch_block if batch_block is not None else _pick_batch_block(N, H)
    assert N % Nb == 0

    # layout plumbing in plain JAX: NCHW -> lane-dense (N, H, W*C) slabs
    x = jnp.transpose(x_nchw, (0, 2, 3, 1)).reshape(N, H, WC)
    w1t = _toeplitz_weight(w1, W)
    w2t = _toeplitz_weight(w2, W)
    b1d = jnp.tile(b1, W).reshape(1, WC).astype(jnp.float32)
    b2d = jnp.tile(b2, W).reshape(1, WC).astype(jnp.float32)

    # Explicit scoped-VMEM sizing (16 MiB default on v5e is the first limit hit
    # once blocks grow): double-buffered in/out image blocks + both Toeplitz
    # weights + the two bf16 padded scratches, with slack for relayouts.
    vmem_bytes = (
        2 * 2 * Nb * H * WC * 4             # in + out blocks, double-buffered f32
        + 2 * 2 * KH * WC * WC * 2          # both Toeplitz weights, double-buffered bf16
        + 2 * Nb * (H + 2 * PAD) * WC * 2   # bf16 padded scratches
    )
    vmem_bytes = int(max(2 * vmem_bytes + (4 << 20), 16 << 20))

    out = pl.pallas_call(
        _resblock_kernel,
        out_shape=jax.ShapeDtypeStruct((N, H, WC), x_nchw.dtype),
        grid_spec=pltpu.PrefetchScalarGridSpec(
            num_scalar_prefetch=0,
            grid=(N // Nb,),
            in_specs=[
                pl.BlockSpec((Nb, H, WC), lambda n: (n, 0, 0)),
                pl.BlockSpec((KH * WC, WC), lambda n: (0, 0)),
                pl.BlockSpec((1, WC), lambda n: (0, 0)),
                pl.BlockSpec((KH * WC, WC), lambda n: (0, 0)),
                pl.BlockSpec((1, WC), lambda n: (0, 0)),
            ],
            out_specs=pl.BlockSpec((Nb, H, WC), lambda n: (n, 0, 0)),
            scratch_shapes=[
                pltpu.VMEM((Nb, H + 2 * PAD, WC), jnp.bfloat16),
                pltpu.VMEM((Nb, H + 2 * PAD, WC), jnp.bfloat16),
            ],
        ),
        compiler_params=pltpu.CompilerParams(
            dimension_semantics=("parallel",),
            vmem_limit_bytes=vmem_bytes,
        ),
    )(x, w1t, b1d, w2t, b2d)

    return jnp.transpose(out.reshape(N, H, W, C), (0, 3, 1, 2))   # back to NCHW


def _reference(x, w1, b1, w2, b2):
    dn = ("NCHW", "OIHW", "NCHW")
    hp = lax.Precision.HIGHEST
    h = lax.conv_general_dilated(x, w1, (1, 1), ((PAD, PAD), (PAD, PAD)),
                                 dimension_numbers=dn, precision=hp)
    h = jnp.maximum(h + b1[None, :, None, None], 0.0)
    h = lax.conv_general_dilated(h, w2, (1, 1), ((PAD, PAD), (PAD, PAD)),
                                 dimension_numbers=dn, precision=hp)
    h = jnp.maximum(h + b2[None, :, None, None], 0.0)
    return jnp.maximum(h + x, 0.0)


if __name__ == "__main__":
    # small shapes: batch=2, in_channel=out_channel=8, spatial=16x16 (W*C = 128)
    N, C, H, W = 2, 8, 16, 16
    key = jax.random.PRNGKey(0)
    kx, k1, k2, kb1, kb2 = jax.random.split(key, 5)

    x = jax.random.normal(kx, (N, C, H, W), dtype=jnp.float32)

    # deterministic PyTorch-style init: U(-k, k), k = 1/sqrt(fan_in)
    k_in = 1.0 / np.sqrt(C * KH * KW)
    w1 = jax.random.uniform(k1, (C, C, KH, KW), jnp.float32, -k_in, k_in)
    b1 = jax.random.uniform(kb1, (C,), jnp.float32, -k_in, k_in)
    w2 = jax.random.uniform(k2, (C, C, KH, KW), jnp.float32, -k_in, k_in)
    b2 = jax.random.uniform(kb2, (C,), jnp.float32, -k_in, k_in)

    out = jax.block_until_ready(conv2d_resblock(x, w1, b1, w2, b2))
    ref = jax.block_until_ready(_reference(x, w1, b1, w2, b2))
    # bf16 MXU matmuls vs f32 HIGHEST reference: ~1e-3-level error expected.
    np.testing.assert_allclose(np.asarray(out), np.asarray(ref), rtol=1e-2, atol=1e-2)

    print("KERNEL_OK")
</pallas_src>

<mosaic_0001>
module attributes {stable_mosaic.version = 11 : i64} {
  func.func @_resblock_kernel(%arg0: i32, %arg1: memref<2x16x128xf32, #tpu.memory_space<vmem>>, %arg2: memref<640x128xbf16, #tpu.memory_space<vmem>>, %arg3: memref<1x128xf32, #tpu.memory_space<vmem>>, %arg4: memref<640x128xbf16, #tpu.memory_space<vmem>>, %arg5: memref<1x128xf32, #tpu.memory_space<vmem>>, %arg6: memref<2x16x128xf32, #tpu.memory_space<vmem>>, %arg7: memref<2x20x128xbf16, #tpu.memory_space<vmem>>, %arg8: memref<2x20x128xbf16, #tpu.memory_space<vmem>>) attributes {dimension_semantics = [#tpu.dimension_semantics<parallel>], iteration_bounds = array<i64: 1>, scalar_prefetch = 0 : i64, scratch_operands = 2 : i64, tpu.core_type = #tpu.core_type<tc>, window_params = [{transform_indices = @transform_0, window_bounds = array<i64: 2, 16, 128>}, {pipeline_mode = #tpu.pipeline_mode<synchronous>, transform_indices = @transform_1, window_bounds = array<i64: 640, 128>}, {pipeline_mode = #tpu.pipeline_mode<synchronous>, transform_indices = @transform_2, window_bounds = array<i64: 1, 128>}, {pipeline_mode = #tpu.pipeline_mode<synchronous>, transform_indices = @transform_3, window_bounds = array<i64: 640, 128>}, {pipeline_mode = #tpu.pipeline_mode<synchronous>, transform_indices = @transform_4, window_bounds = array<i64: 1, 128>}, {transform_indices = @transform_5, window_bounds = array<i64: 2, 16, 128>}]} {
    %cst = arith.constant 0.000000e+00 : bf16
    %0 = vector.broadcast %cst : bf16 to vector<2x2x128xbf16>
    %c0 = arith.constant 0 : index
    %c0_0 = arith.constant 0 : index
    %c0_1 = arith.constant 0 : index
    %1 = vector.load %arg7[%c0, %c0_0, %c0_1] : memref<2x20x128xbf16, #tpu.memory_space<vmem>>, vector<2x2x128xbf16>
    tpu.vector_store %arg7[%c0, %c0_0, %c0_1], %0 {strides = array<i32>} : memref<2x20x128xbf16, #tpu.memory_space<vmem>>, vector<2x2x128xbf16>,
    %c0_2 = arith.constant 0 : index
    %c18 = arith.constant 18 : index
    %c0_3 = arith.constant 0 : index
    %2 = vector.load %arg7[%c0_2, %c18, %c0_3] : memref<2x20x128xbf16, #tpu.memory_space<vmem>>, vector<2x2x128xbf16>
    tpu.vector_store %arg7[%c0_2, %c18, %c0_3], %0 {strides = array<i32>} : memref<2x20x128xbf16, #tpu.memory_space<vmem>>, vector<2x2x128xbf16>,
    %c0_4 = arith.constant 0 : index
    %c0_5 = arith.constant 0 : index
    %c0_6 = arith.constant 0 : index
    %3 = vector.load %arg8[%c0_4, %c0_5, %c0_6] : memref<2x20x128xbf16, #tpu.memory_space<vmem>>, vector<2x2x128xbf16>
    tpu.vector_store %arg8[%c0_4, %c0_5, %c0_6], %0 {strides = array<i32>} : memref<2x20x128xbf16, #tpu.memory_space<vmem>>, vector<2x2x128xbf16>,
    %c0_7 = arith.constant 0 : index
    %c18_8 = arith.constant 18 : index
    %c0_9 = arith.constant 0 : index
    %4 = vector.load %arg8[%c0_7, %c18_8, %c0_9] : memref<2x20x128xbf16, #tpu.memory_space<vmem>>, vector<2x2x128xbf16>
    tpu.vector_store %arg8[%c0_7, %c18_8, %c0_9], %0 {strides = array<i32>} : memref<2x20x128xbf16, #tpu.memory_space<vmem>>, vector<2x2x128xbf16>,
    %c0_10 = arith.constant 0 : index
    %c0_11 = arith.constant 0 : index
    %c0_12 = arith.constant 0 : index
    %5 = vector.load %arg1[%c0_10, %c0_11, %c0_12] : memref<2x16x128xf32, #tpu.memory_space<vmem>>, vector<2x16x128xf32>
    %6 = arith.truncf %5 : vector<2x16x128xf32> to vector<2x16x128xbf16>
    %c0_13 = arith.constant 0 : index
    %c2 = arith.constant 2 : index
    %c0_14 = arith.constant 0 : index
    %7 = vector.load %arg7[%c0_13, %c2, %c0_14] : memref<2x20x128xbf16, #tpu.memory_space<vmem>>, vector<2x16x128xbf16>
    tpu.vector_store %arg7[%c0_13, %c2, %c0_14], %6 {strides = array<i32>} : memref<2x20x128xbf16, #tpu.memory_space<vmem>>, vector<2x16x128xbf16>,
    %c0_15 = arith.constant 0 : index
    %c0_16 = arith.constant 0 : index
    %c0_17 = arith.constant 0 : index
    %8 = vector.load %arg7[%c0_15, %c0_16, %c0_17] : memref<2x20x128xbf16, #tpu.memory_space<vmem>>, vector<2x16x128xbf16>
    %9 = vector.shape_cast %8 : vector<2x16x128xbf16> to vector<32x128xbf16>
    %c0_18 = arith.constant 0 : index
    %c1 = arith.constant 1 : index
    %c0_19 = arith.constant 0 : index
    %10 = vector.load %arg7[%c0_18, %c1, %c0_19] : memref<2x20x128xbf16, #tpu.memory_space<vmem>>, vector<2x16x128xbf16>
    %11 = vector.shape_cast %10 : vector<2x16x128xbf16> to vector<32x128xbf16>
    %c0_20 = arith.constant 0 : index
    %c2_21 = arith.constant 2 : index
    %c0_22 = arith.constant 0 : index
    %12 = vector.load %arg7[%c0_20, %c2_21, %c0_22] : memref<2x20x128xbf16, #tpu.memory_space<vmem>>, vector<2x16x128xbf16>
    %13 = vector.shape_cast %12 : vector<2x16x128xbf16> to vector<32x128xbf16>
    %c0_23 = arith.constant 0 : index
    %c3 = arith.constant 3 : index
    %c0_24 = arith.constant 0 : index
    %14 = vector.load %arg7[%c0_23, %c3, %c0_24] : memref<2x20x128xbf16, #tpu.memory_space<vmem>>, vector<2x16x128xbf16>
    %15 = vector.shape_cast %14 : vector<2x16x128xbf16> to vector<32x128xbf16>
    %c0_25 = arith.constant 0 : index
    %c4 = arith.constant 4 : index
    %c0_26 = arith.constant 0 : index
    %16 = vector.load %arg7[%c0_25, %c4, %c0_26] : memref<2x20x128xbf16, #tpu.memory_space<vmem>>, vector<2x16x128xbf16>
    %17 = vector.shape_cast %16 : vector<2x16x128xbf16> to vector<32x128xbf16>
    %18 = tpu.concatenate %9, %11, %13, %15, %17 in 1 : vector<32x128xbf16>, vector<32x128xbf16>, vector<32x128xbf16>, vector<32x128xbf16>, vector<32x128xbf16> -> vector<32x640xbf16>
    %c0_27 = arith.constant 0 : index
    %c0_28 = arith.constant 0 : index
    %19 = vector.load %arg2[%c0_27, %c0_28] : memref<640x128xbf16, #tpu.memory_space<vmem>>, vector<640x128xbf16>
    %cst_29 = arith.constant dense<0.000000e+00> : vector<32x128xf32>
    %20 = tpu.matmul %18, %19, %cst_29 {dimension_numbers = #tpu.dot_dimension_numbers<[1], [0], [0], [1], [0, 0, 1, 1], [], []>} : vector<32x640xbf16>, vector<640x128xbf16>, vector<32x128xf32> -> vector<32x128xf32>
    %c0_30 = arith.constant 0 : index
    %c0_31 = arith.constant 0 : index
    %21 = vector.load %arg3[%c0_30, %c0_31] : memref<1x128xf32, #tpu.memory_space<vmem>>, vector<1x128xf32>
    %22 = vector.broadcast %21 : vector<1x128xf32> to vector<32x128xf32>
    %23 = arith.addf %20, %22 : vector<32x128xf32>
    %cst_32 = arith.constant 0.000000e+00 : f32
    %24 = vector.broadcast %cst_32 : f32 to vector<32x128xf32>
    %25 = arith.maximumf %23, %24 : vector<32x128xf32>
    %26 = vector.shape_cast %25 : vector<32x128xf32> to vector<2x16x128xf32>
    %27 = arith.truncf %26 : vector<2x16x128xf32> to vector<2x16x128xbf16>
    %c0_33 = arith.constant 0 : index
    %c2_34 = arith.constant 2 : index
    %c0_35 = arith.constant 0 : index
    %28 = vector.load %arg8[%c0_33, %c2_34, %c0_35] : memref<2x20x128xbf16, #tpu.memory_space<vmem>>, vector<2x16x128xbf16>
    tpu.vector_store %arg8[%c0_33, %c2_34, %c0_35], %27 {strides = array<i32>} : memref<2x20x128xbf16, #tpu.memory_space<vmem>>, vector<2x16x128xbf16>,
    %c0_36 = arith.constant 0 : index
    %c0_37 = arith.constant 0 : index
    %c0_38 = arith.constant 0 : index
    %29 = vector.load %arg8[%c0_36, %c0_37, %c0_38] : memref<2x20x128xbf16, #tpu.memory_space<vmem>>, vector<2x16x128xbf16>
    %30 = vector.shape_cast %29 : vector<2x16x128xbf16> to vector<32x128xbf16>
    %c0_39 = arith.constant 0 : index
    %c1_40 = arith.constant 1 : index
    %c0_41 = arith.constant 0 : index
    %31 = vector.load %arg8[%c0_39, %c1_40, %c0_41] : memref<2x20x128xbf16, #tpu.memory_space<vmem>>, vector<2x16x128xbf16>
    %32 = vector.shape_cast %31 : vector<2x16x128xbf16> to vector<32x128xbf16>
    %c0_42 = arith.constant 0 : index
    %c2_43 = arith.constant 2 : index
    %c0_44 = arith.constant 0 : index
    %33 = vector.load %arg8[%c0_42, %c2_43, %c0_44] : memref<2x20x128xbf16, #tpu.memory_space<vmem>>, vector<2x16x128xbf16>
    %34 = vector.shape_cast %33 : vector<2x16x128xbf16> to vector<32x128xbf16>
    %c0_45 = arith.constant 0 : index
    %c3_46 = arith.constant 3 : index
    %c0_47 = arith.constant 0 : index
    %35 = vector.load %arg8[%c0_45, %c3_46, %c0_47] : memref<2x20x128xbf16, #tpu.memory_space<vmem>>, vector<2x16x128xbf16>
    %36 = vector.shape_cast %35 : vector<2x16x128xbf16> to vector<32x128xbf16>
    %c0_48 = arith.constant 0 : index
    %c4_49 = arith.constant 4 : index
    %c0_50 = arith.constant 0 : index
    %37 = vector.load %arg8[%c0_48, %c4_49, %c0_50] : memref<2x20x128xbf16, #tpu.memory_space<vmem>>, vector<2x16x128xbf16>
    %38 = vector.shape_cast %37 : vector<2x16x128xbf16> to vector<32x128xbf16>
    %39 = tpu.concatenate %30, %32, %34, %36, %38 in 1 : vector<32x128xbf16>, vector<32x128xbf16>, vector<32x128xbf16>, vector<32x128xbf16>, vector<32x128xbf16> -> vector<32x640xbf16>
    %c0_51 = arith.constant 0 : index
    %c0_52 = arith.constant 0 : index
    %40 = vector.load %arg4[%c0_51, %c0_52] : memref<640x128xbf16, #tpu.memory_space<vmem>>, vector<640x128xbf16>
    %cst_53 = arith.constant dense<0.000000e+00> : vector<32x128xf32>
    %41 = tpu.matmul %39, %40, %cst_53 {dimension_numbers = #tpu.dot_dimension_numbers<[1], [0], [0], [1], [0, 0, 1, 1], [], []>} : vector<32x640xbf16>, vector<640x128xbf16>, vector<32x128xf32> -> vector<32x128xf32>
    %c0_54 = arith.constant 0 : index
    %c0_55 = arith.constant 0 : index
    %42 = vector.load %arg5[%c0_54, %c0_55] : memref<1x128xf32, #tpu.memory_space<vmem>>, vector<1x128xf32>
    %43 = vector.broadcast %42 : vector<1x128xf32> to vector<32x128xf32>
    %44 = arith.addf %41, %43 : vector<32x128xf32>
    %cst_56 = arith.constant 0.000000e+00 : f32
    %45 = vector.broadcast %cst_56 : f32 to vector<32x128xf32>
    %46 = arith.maximumf %44, %45 : vector<32x128xf32>
    %47 = vector.shape_cast %46 : vector<32x128xf32> to vector<2x16x128xf32>
    %48 = arith.addf %47, %5 : vector<2x16x128xf32>
    %cst_57 = arith.constant 0.000000e+00 : f32
    %49 = vector.broadcast %cst_57 : f32 to vector<2x16x128xf32>
    %50 = arith.maximumf %48, %49 : vector<2x16x128xf32>
    %c0_58 = arith.constant 0 : index
    %c0_59 = arith.constant 0 : index
    %c0_60 = arith.constant 0 : index
    %51 = vector.load %arg6[%c0_58, %c0_59, %c0_60] : memref<2x16x128xf32, #tpu.memory_space<vmem>>, vector<2x16x128xf32>
    tpu.vector_store %arg6[%c0_58, %c0_59, %c0_60], %50 {strides = array<i32>} : memref<2x16x128xf32, #tpu.memory_space<vmem>>, vector<2x16x128xf32>,
    return
  }
  func.func @transform_0(%arg0: i32) -> (i32, i32, i32) {
    %c0_i32 = arith.constant 0 : i32
    %c0_i32_0 = arith.constant 0 : i32
    %c0_i32_1 = arith.constant 0 : i32
    return %arg0, %c0_i32, %c0_i32_0 : i32, i32, i32
  }
  func.func @transform_1(%arg0: i32) -> (i32, i32) {
    %c0_i32 = arith.constant 0 : i32
    %c0_i32_0 = arith.constant 0 : i32
    %c0_i32_1 = arith.constant 0 : i32
    return %c0_i32, %c0_i32_0 : i32, i32
  }
  func.func @transform_2(%arg0: i32) -> (i32, i32) {
    %c0_i32 = arith.constant 0 : i32
    %c0_i32_0 = arith.constant 0 : i32
    %c0_i32_1 = arith.constant 0 : i32
    return %c0_i32, %c0_i32_0 : i32, i32
  }
  func.func @transform_3(%arg0: i32) -> (i32, i32) {
    %c0_i32 = arith.constant 0 : i32
    %c0_i32_0 = arith.constant 0 : i32
    %c0_i32_1 = arith.constant 0 : i32
    return %c0_i32, %c0_i32_0 : i32, i32
  }
  func.func @transform_4(%arg0: i32) -> (i32, i32) {
    %c0_i32 = arith.constant 0 : i32
    %c0_i32_0 = arith.constant 0 : i32
    %c0_i32_1 = arith.constant 0 : i32
    return %c0_i32, %c0_i32_0 : i32, i32
  }
  func.func @transform_5(%arg0: i32) -> (i32, i32, i32) {
    %c0_i32 = arith.constant 0 : i32
    %c0_i32_0 = arith.constant 0 : i32
    %c0_i32_1 = arith.constant 0 : i32
    return %arg0, %c0_i32, %c0_i32_0 : i32, i32, i32
  }
}

</mosaic_0001>

<llo_original>
// kernel: tpu_custom_call.1
$region0: #{tpu_custom_call.1}
  #allocation0 [shape = 'u32[]', space=smem, size = 0x4, offset = 0x4, fixed_abs, tag = 'smem constant byte address 0x4 - core index']
  #allocation1 [shape = 'u32[144,128]{1,0:T(1,128)}', space=vmem, size = 0x12000, scoped, tag = 'internal scratch']
  #allocation2 [shape = 'bf16[2,20,128]{2,1,0:T(8,128)(2,1)}', space=vmem, size = 0x3000, scoped, tag = 'scratch operand']
  #allocation3 [shape = 'bf16[2,20,128]{2,1,0:T(8,128)(2,1)}', space=vmem, size = 0x3000, scoped, tag = 'scratch operand']
  %s0 = inlined_call_operand.hbm [shape: f32[2,16,128], index: 0, kind: input, shape index: {}]
  %s1 = inlined_call_operand.hbm [shape: bf16[640,128], index: 1, kind: input, shape index: {}]
  %s2 = inlined_call_operand.vmem [shape: f32[1,128], index: 2, kind: input, shape index: {}]
  %s3 = inlined_call_operand.hbm [shape: bf16[640,128], index: 3, kind: input, shape index: {}]
  %s4 = inlined_call_operand.vmem [shape: f32[1,128], index: 4, kind: input, shape index: {}]
  %s5 = inlined_call_operand.hbm [shape: f32[2,16,128], index: 5, kind: output, shape index: {}]
  %s6 = sld [smem:[#allocation0]]
  $region42: #{tpu_custom_call.1} parent=0
    _
  %s8 = ssub.s32 1, %s6
  %s9 = scalar_select 0, %s8, %s6
  $region1: #{tpu_custom_call.1} parent=0
    #allocation4 [shape = 'u8[16384]{0}', space=vmem, size = 0x4000, scoped, tag = 'input window, operand 0, single buffered']
    #allocation5 [shape = 's32[1]{0}', space=sflag, size = 0x4, scoped, tag = 'scoped memory for tpu_custom_call.1']
    #allocation6 [shape = 's32[1]{0}', space=sflag, size = 0x4, scoped, tag = 'scoped memory for tpu_custom_call.1']
    #allocation7 [shape = 'u8[163840]{0}', space=vmem, size = 0x28000, scoped, tag = 'input window, operand 1, single buffered']
    #allocation8 [shape = 's32[1]{0}', space=sflag, size = 0x4, scoped, tag = 'scoped memory for tpu_custom_call.1']
    #allocation9 [shape = 'u8[163840]{0}', space=vmem, size = 0x28000, scoped, tag = 'input window, operand 3, single buffered']
    #allocation10 [shape = 'u8[16384]{0}', space=vmem, size = 0x4000, scoped, tag = 'output window, operand 0, single buffered']
    %10 = vsyncpa [#allocation5], 0
    %11 = vsyncpa [#allocation8], 0
    %12 = vsyncpa [#allocation6], 0
    // Predicated region
    $region2: #{tpu_custom_call.1} parent=1 // pred_check
      _
    $region3: #{tpu_custom_call.1} parent=1 // pred_check_branch
      %14 = sbr.rel (0) target = $region5
    $region4: #{tpu_custom_call.1} parent=1 // pred_region
      %s16 = ssub.s32 512, 512
      %17 = vsyncadd [#allocation5], %s16
      %s18 = sshll.u32 [#allocation4], 4
      %s19 = int_to_ptr.vmem [resolvable:$true] %s18
      %24 = dma.hbm_to_vmem [thread:$0]  %s0, 512, %s19, [#allocation5], 128, 128, 8
    $region5: #{tpu_custom_call.1} parent=1 // pred_fallthru
      _
    // Predicated region
    $region6: #{tpu_custom_call.1} parent=1 // pred_check
      _
    $region7: #{tpu_custom_call.1} parent=1 // pred_check_branch
      %26 = sbr.rel (0) target = $region9
    $region8: #{tpu_custom_call.1} parent=1 // pred_region
      %s28 = ssub.s32 5120, 5120
      %29 = vsyncadd [#allocation8], %s28
      %s30 = sshll.u32 [#allocation7], 4
      %s31 = int_to_ptr.vmem [resolvable:$true] %s30
      %36 = dma.hbm_to_vmem [thread:$0]  %s1, 5120, %s31, [#allocation8], 64, 64, 4
    $region9: #{tpu_custom_call.1} parent=1 // pred_fallthru
      _
    // Predicated region
    $region10: #{tpu_custom_call.1} parent=1 // pred_check
      _
    $region11: #{tpu_custom_call.1} parent=1 // pred_check_branch
      %38 = sbr.rel (0) target = $region13
    $region12: #{tpu_custom_call.1} parent=1 // pred_region
      _
    $region13: #{tpu_custom_call.1} parent=1 // pred_fallthru
      _
    // Predicated region
    $region14: #{tpu_custom_call.1} parent=1 // pred_check
      _
    $region15: #{tpu_custom_call.1} parent=1 // pred_check_branch
      %40 = sbr.rel (0) target = $region17
    $region16: #{tpu_custom_call.1} parent=1 // pred_region
      %s42 = ssub.s32 5120, 5120
      %43 = vsyncadd [#allocation8], %s42
      %s44 = sshll.u32 [#allocation9], 4
      %s45 = int_to_ptr.vmem [resolvable:$true] %s44
      %50 = dma.hbm_to_vmem [thread:$0]  %s3, 5120, %s45, [#allocation8], 64, 64, 4
    $region17: #{tpu_custom_call.1} parent=1 // pred_fallthru
      _
    // Predicated region
    $region18: #{tpu_custom_call.1} parent=1 // pred_check
      _
    $region19: #{tpu_custom_call.1} parent=1 // pred_check_branch
      %52 = sbr.rel (0) target = $region21
    $region20: #{tpu_custom_call.1} parent=1 // pred_region
      _
    $region21: #{tpu_custom_call.1} parent=1 // pred_fallthru
      _
    // Predicated region
    $region22: #{tpu_custom_call.1} parent=1 // pred_check
      _
    $region23: #{tpu_custom_call.1} parent=1 // pred_check_branch
      %54 = sbr.rel (0) target = $region25
    $region24: #{tpu_custom_call.1} parent=1 // pred_region
      %55 = dma.done [#allocation5], 512
    $region25: #{tpu_custom_call.1} parent=1 // pred_fallthru
      _
    // Predicated region
    $region26: #{tpu_custom_call.1} parent=1 // pred_check
      _
    $region27: #{tpu_custom_call.1} parent=1 // pred_check_branch
      %57 = sbr.rel (0) target = $region29
    $region28: #{tpu_custom_call.1} parent=1 // pred_region
      %58 = dma.done [#allocation8], 5120
    $region29: #{tpu_custom_call.1} parent=1 // pred_fallthru
      _
    // Predicated region
    $region30: #{tpu_custom_call.1} parent=1 // pred_check
      _
    $region31: #{tpu_custom_call.1} parent=1 // pred_check_branch
      %60 = sbr.rel (0) target = $region33
    $region32: #{tpu_custom_call.1} parent=1 // pred_region
      %61 = dma.done [#allocation8], 5120
    $region33: #{tpu_custom_call.1} parent=1 // pred_fallthru
      _
    %63 = vst [vmem:[#allocation2] sm:$0x1] 0
    %64 = vst [vmem:[#allocation2 + $0xc] sm:$0x1] 0
    %65 = vst [vmem:[#allocation2 + $0x8] sm:$0x2] 0
    %66 = vst [vmem:[#allocation2 + $0x14] sm:$0x2] 0
    %67 = vst [vmem:[#allocation3] sm:$0x1] 0
    %68 = vst [vmem:[#allocation3 + $0xc] sm:$0x1] 0
    %69 = vst [vmem:[#allocation3 + $0x8] sm:$0x2] 0
    %70 = vst [vmem:[#allocation3 + $0x14] sm:$0x2] 0
    %v71 = vld [vmem:[#allocation4] sm:$0xff]
    %v72 = vld [vmem:[#allocation4 + $0x8] sm:$0xff]
    %v73 = vld [vmem:[#allocation4 + $0x10] sm:$0xff]
    %v74 = vld [vmem:[#allocation4 + $0x18] sm:$0xff]
    %v75 = vpack.c.bf16 %v72, %v71
    %v76 = vpack.c.bf16 %v74, %v73
    %v79 = vunpack.c.l.b16 %v75
    %v80 = vunpack.c.h.b16 %v75
    %v81 = vunpack.c.l.b16 %v76
    %v82 = vunpack.c.h.b16 %v76
    %v83 = vpack.c.b16 %v79, %v79
    %v84 = vpack.c.b16 %v80, %v80
    %v85 = vpack.c.b16 %v81, %v81
    %v86 = vpack.c.b16 %v82, %v82
    %vm87 = vcmask 1040384
    %vm88 = vcmask 1044484
    %vm89 = vmor %vm87, %vm88
    %v90 = vrot.slane %v83, 7
    %v91 = vrot.slane %v90, 4
    %v92 = vrot.slane %v84, 7
    %v93 = vsel %vm89, %v91, %v92
    %v94 = vrot.slane %v92, 4
    %v95 = vrot.slane %v85, 7
    %v96 = vrot.slane %v95, 4
    %v97 = vrot.slane %v86, 7
    %v98 = vsel %vm89, %v96, %v97
    %v99 = vrot.slane %v97, 4
    %106 = vst [vmem:[#allocation2] sm:$0xe] %v90
    %107 = vst [vmem:[#allocation2 + $0x4] sm:$0xf] %v93
    %108 = vst [vmem:[#allocation2 + $0x8] sm:$0x1] %v94
    %109 = vst [vmem:[#allocation2 + $0xc] sm:$0xe] %v95
    %110 = vst [vmem:[#allocation2 + $0x10] sm:$0xf] %v98
    %111 = vst [vmem:[#allocation2 + $0x14] sm:$0x1] %v99
    %v112 = vld [vmem:[#allocation2] sm:$0xf]
    %v113 = vld [vmem:[#allocation2 + $0x4] sm:$0xf]
    %v114 = vld [vmem:[#allocation2 + $0xc] sm:$0xf]
    %v115 = vld [vmem:[#allocation2 + $0x10] sm:$0xf]
    %v116 = vld [vmem:[#allocation2 + $0x8] sm:$0x1]
    %v117 = vld [vmem:[#allocation2 + $0x14] sm:$0x1]
    %vm118 = vsmask.f32 3328
    %vm119 = vsmask.f32 7440
    %vm120 = vmor %vm118, %vm119
    %v122 = vshrl.u32 %v112, 16
    %v124 = vrot.slane %v122, 4
    %v125 = vshll.u32 %v112, 16
    %v127 = vrot.slane %v125, 5
    %v128 = vor.u32 %v124, %v127
    %v129 = vrot.slane %v128, 4
    %v131 = vshll.u32 %v113, 16
    %v133 = vrot.slane %v131, 5
    %v134 = vsel %vm120, %v129, %v133
    %v135 = vshrl.u32 %v113, 16
    %v137 = vrot.slane %v135, 4
    %v138 = vor.u32 %v137, %v133
    %v139 = vrot.slane %v138, 4
    %v141 = vshll.u32 %v116, 16
    %v143 = vrot.slane %v141, 5
    %v144 = vsel %vm120, %v139, %v143
    %v146 = vshrl.u32 %v114, 16
    %v148 = vrot.slane %v146, 4
    %v149 = vshll.u32 %v114, 16
    %v151 = vrot.slane %v149, 5
    %v152 = vor.u32 %v148, %v151
    %v153 = vrot.slane %v152, 4
    %v155 = vshll.u32 %v115, 16
    %v157 = vrot.slane %v155, 5
    %v158 = vsel %vm120, %v153, %v157
    %v159 = vshrl.u32 %v115, 16
    %v161 = vrot.slane %v159, 4
    %v162 = vor.u32 %v161, %v157
    %v163 = vrot.slane %v162, 4
    %v165 = vshll.u32 %v117, 16
    %v167 = vrot.slane %v165, 5
    %v168 = vsel %vm120, %v163, %v167
    %v169 = vld [vmem:[#allocation2] sm:$0xe]
    %v170 = vld [vmem:[#allocation2 + $0xc] sm:$0xe]
    %vm177 = vcmask 1042432
    %vm178 = vcmask 1046532
    %vm179 = vmor %vm177, %vm178
    %v180 = vrot.slane %v169, 5
    %v181 = vrot.slane %v180, 4
    %v182 = vrot.slane %v113, 5
    %v183 = vsel %vm179, %v181, %v182
    %v184 = vrot.slane %v182, 4
    %v185 = vrot.slane %v116, 5
    %v186 = vsel %vm179, %v184, %v185
    %v187 = vrot.slane %v170, 5
    %v188 = vrot.slane %v187, 4
    %v189 = vrot.slane %v115, 5
    %v190 = vsel %vm179, %v188, %v189
    %v191 = vrot.slane %v189, 4
    %v192 = vrot.slane %v117, 5
    %v193 = vsel %vm179, %v191, %v192
    %v194 = vld [vmem:[#allocation2 + $0x8] sm:$0x3]
    %v195 = vld [vmem:[#allocation2 + $0x14] sm:$0x3]
    %vm196 = vsmask.f32 2304
    %vm197 = vsmask.f32 6416
    %vm198 = vmor %vm196, %vm197
    %v200 = vshrl.u32 %v169, 16
    %v202 = vrot.slane %v200, 5
    %v203 = vshll.u32 %v169, 16
    %v205 = vrot.slane %v203, 6
    %v206 = vor.u32 %v202, %v205
    %v207 = vrot.slane %v206, 4
    %v208 = vrot.slane %v135, 5
    %v209 = vrot.slane %v131, 6
    %v210 = vor.u32 %v208, %v209
    %v211 = vsel %vm198, %v207, %v210
    %v212 = vrot.slane %v210, 4
    %v214 = vshrl.u32 %v194, 16
    %v216 = vrot.slane %v214, 5
    %v217 = vshll.u32 %v194, 16
    %v219 = vrot.slane %v217, 6
    %v220 = vor.u32 %v216, %v219
    %v221 = vsel %vm198, %v212, %v220
    %v223 = vshrl.u32 %v170, 16
    %v225 = vrot.slane %v223, 5
    %v226 = vshll.u32 %v170, 16
    %v228 = vrot.slane %v226, 6
    %v229 = vor.u32 %v225, %v228
    %v230 = vrot.slane %v229, 4
    %v231 = vrot.slane %v159, 5
    %v232 = vrot.slane %v155, 6
    %v233 = vor.u32 %v231, %v232
    %v234 = vsel %vm198, %v230, %v233
    %v235 = vrot.slane %v233, 4
    %v237 = vshrl.u32 %v195, 16
    %v239 = vrot.slane %v237, 5
    %v240 = vshll.u32 %v195, 16
    %v242 = vrot.slane %v240, 6
    %v243 = vor.u32 %v239, %v242
    %v244 = vsel %vm198, %v235, %v243
    %v245 = vld [vmem:[#allocation2] sm:$0xc]
    %v246 = vld [vmem:[#allocation2 + $0xc] sm:$0xc]
    %vm251 = vcmask 1041408
    %vm252 = vcmask 1045508
    %vm253 = vmor %vm251, %vm252
    %v254 = vrot.slane %v245, 6
    %v255 = vrot.slane %v254, 4
    %v256 = vrot.slane %v113, 6
    %v257 = vsel %vm253, %v255, %v256
    %v258 = vrot.slane %v256, 4
    %v259 = vrot.slane %v194, 6
    %v260 = vsel %vm253, %v258, %v259
    %v261 = vrot.slane %v246, 6
    %v262 = vrot.slane %v261, 4
    %v263 = vrot.slane %v115, 6
    %v264 = vsel %vm253, %v262, %v263
    %v265 = vrot.slane %v263, 4
    %v266 = vrot.slane %v195, 6
    %v267 = vsel %vm253, %v265, %v266
    %v270 = vunpack.c.l.b16 %v112
    %v271 = vunpack.c.l.b16 %v113
    %v272 = vunpack.c.l.b16 %v114
    %v273 = vunpack.c.l.b16 %v115
    %v274 = vpack.c.b16 %v271, %v270
    %v275 = vpack.c.b16 %v273, %v272
    %v278 = vunpack.c.l.b16 %v134
    %v279 = vunpack.c.l.b16 %v144
    %v280 = vunpack.c.l.b16 %v158
    %v281 = vunpack.c.l.b16 %v168
    %v282 = vpack.c.b16 %v279, %v278
    %v283 = vpack.c.b16 %v281, %v280
    %v286 = vunpack.c.l.b16 %v183
    %v287 = vunpack.c.l.b16 %v186
    %v288 = vunpack.c.l.b16 %v190
    %v289 = vunpack.c.l.b16 %v193
    %v290 = vpack.c.b16 %v287, %v286
    %v291 = vpack.c.b16 %v289, %v288
    %v294 = vunpack.c.l.b16 %v211
    %v295 = vunpack.c.l.b16 %v221
    %v296 = vunpack.c.l.b16 %v234
    %v297 = vunpack.c.l.b16 %v244
    %v298 = vpack.c.b16 %v295, %v294
    %v299 = vpack.c.b16 %v297, %v296
    %v302 = vunpack.c.l.b16 %v257
    %v303 = vunpack.c.l.b16 %v260
    %v304 = vunpack.c.l.b16 %v264
    %v305 = vunpack.c.l.b16 %v267
    %v306 = vpack.c.b16 %v303, %v302
    %v307 = vpack.c.b16 %v305, %v304
    %v310 = vld [vmem:[#allocation7] sm:$0xf]
    %v311 = vld [vmem:[#allocation7 + $0x4] sm:$0xf]
    %v312 = vld [vmem:[#allocation7 + $0x8] sm:$0xf]
    %v313 = vld [vmem:[#allocation7 + $0xc] sm:$0xf]
    %v314 = vld [vmem:[#allocation7 + $0x10] sm:$0xf]
    %v315 = vld [vmem:[#allocation7 + $0x14] sm:$0xf]
    %v316 = vld [vmem:[#allocation7 + $0x18] sm:$0xf]
    %v317 = vld [vmem:[#allocation7 + $0x1c] sm:$0xf]
    %v318 = vld [vmem:[#allocation7 + $0x20] sm:$0xf]
    %v319 = vld [vmem:[#allocation7 + $0x24] sm:$0xf]
    %v320 = vld [vmem:[#allocation7 + $0x28] sm:$0xf]
    %v321 = vld [vmem:[#allocation7 + $0x2c] sm:$0xf]
    %v322 = vld [vmem:[#allocation7 + $0x30] sm:$0xf]
    %v323 = vld [vmem:[#allocation7 + $0x34] sm:$0xf]
    %v324 = vld [vmem:[#allocation7 + $0x38] sm:$0xf]
    %v325 = vld [vmem:[#allocation7 + $0x3c] sm:$0xf]
    %v326 = vld [vmem:[#allocation7 + $0x40] sm:$0xf]
    %v327 = vld [vmem:[#allocation7 + $0x44] sm:$0xf]
    %v328 = vld [vmem:[#allocation7 + $0x48] sm:$0xf]
    %v329 = vld [vmem:[#allocation7 + $0x4c] sm:$0xf]
    %v330 = vld [vmem:[#allocation7 + $0x50] sm:$0xf]
    %v331 = vld [vmem:[#allocation7 + $0x54] sm:$0xf]
    %v332 = vld [vmem:[#allocation7 + $0x58] sm:$0xf]
    %v333 = vld [vmem:[#allocation7 + $0x5c] sm:$0xf]
    %v334 = vld [vmem:[#allocation7 + $0x60] sm:$0xf]
    %v335 = vld [vmem:[#allocation7 + $0x64] sm:$0xf]
    %v336 = vld [vmem:[#allocation7 + $0x68] sm:$0xf]
    %v337 = vld [vmem:[#allocation7 + $0x6c] sm:$0xf]
    %v338 = vld [vmem:[#allocation7 + $0x70] sm:$0xf]
    %v339 = vld [vmem:[#allocation7 + $0x74] sm:$0xf]
    %v340 = vld [vmem:[#allocation7 + $0x78] sm:$0xf]
    %v341 = vld [vmem:[#allocation7 + $0x7c] sm:$0xf]
    %v342 = vld [vmem:[#allocation7 + $0x80] sm:$0xf]
    %v343 = vld [vmem:[#allocation7 + $0x84] sm:$0xf]
    %v344 = vld [vmem:[#allocation7 + $0x88] sm:$0xf]
    %v345 = vld [vmem:[#allocation7 + $0x8c] sm:$0xf]
    %v346 = vld [vmem:[#allocation7 + $0x90] sm:$0xf]
    %v347 = vld [vmem:[#allocation7 + $0x94] sm:$0xf]
    %v348 = vld [vmem:[#allocation7 + $0x98] sm:$0xf]
    %v349 = vld [vmem:[#allocation7 + $0x9c] sm:$0xf]
    %v350 = vld [vmem:[#allocation7 + $0xa0] sm:$0xf]
    %v351 = vld [vmem:[#allocation7 + $0xa4] sm:$0xf]
    %v352 = vld [vmem:[#allocation7 + $0xa8] sm:$0xf]
    %v353 = vld [vmem:[#allocation7 + $0xac] sm:$0xf]
    %v354 = vld [vmem:[#allocation7 + $0xb0] sm:$0xf]
    %v355 = vld [vmem:[#allocation7 + $0xb4] sm:$0xf]
    %v356 = vld [vmem:[#allocation7 + $0xb8] sm:$0xf]
    %v357 = vld [vmem:[#allocation7 + $0xbc] sm:$0xf]
    %v358 = vld [vmem:[#allocation7 + $0xc0] sm:$0xf]
    %v359 = vld [vmem:[#allocation7 + $0xc4] sm:$0xf]
    %v360 = vld [vmem:[#allocation7 + $0xc8] sm:$0xf]
    %v361 = vld [vmem:[#allocation7 + $0xcc] sm:$0xf]
    %v362 = vld [vmem:[#allocation7 + $0xd0] sm:$0xf]
    %v363 = vld [vmem:[#allocation7 + $0xd4] sm:$0xf]
    %v364 = vld [vmem:[#allocation7 + $0xd8] sm:$0xf]
    %v365 = vld [vmem:[#allocation7 + $0xdc] sm:$0xf]
    %v366 = vld [vmem:[#allocation7 + $0xe0] sm:$0xf]
    %v367 = vld [vmem:[#allocation7 + $0xe4] sm:$0xf]
    %v368 = vld [vmem:[#allocation7 + $0xe8] sm:$0xf]
    %v369 = vld [vmem:[#allocation7 + $0xec] sm:$0xf]
    %v370 = vld [vmem:[#allocation7 + $0xf0] sm:$0xf]
    %v371 = vld [vmem:[#allocation7 + $0xf4] sm:$0xf]
    %v372 = vld [vmem:[#allocation7 + $0xf8] sm:$0xf]
    %v373 = vld [vmem:[#allocation7 + $0xfc] sm:$0xf]
    %v374 = vld [vmem:[#allocation7 + $0x100] sm:$0xf]
    %v375 = vld [vmem:[#allocation7 + $0x104] sm:$0xf]
    %v376 = vld [vmem:[#allocation7 + $0x108] sm:$0xf]
    %v377 = vld [vmem:[#allocation7 + $0x10c] sm:$0xf]
    %v378 = vld [vmem:[#allocation7 + $0x110] sm:$0xf]
    %v379 = vld [vmem:[#allocation7 + $0x114] sm:$0xf]
    %v380 = vld [vmem:[#allocation7 + $0x118] sm:$0xf]
    %v381 = vld [vmem:[#allocation7 + $0x11c] sm:$0xf]
    %v382 = vld [vmem:[#allocation7 + $0x120] sm:$0xf]
    %v383 = vld [vmem:[#allocation7 + $0x124] sm:$0xf]
    %v384 = vld [vmem:[#allocation7 + $0x128] sm:$0xf]
    %v385 = vld [vmem:[#allocation7 + $0x12c] sm:$0xf]
    %v386 = vld [vmem:[#allocation7 + $0x130] sm:$0xf]
    %v387 = vld [vmem:[#allocation7 + $0x134] sm:$0xf]
    %v388 = vld [vmem:[#allocation7 + $0x138] sm:$0xf]
    %v389 = vld [vmem:[#allocation7 + $0x13c] sm:$0xf]
    %v390 = vld [vmem:[%s2] sm:$0x1]
    %v392 = vlaneseq
    %v393 = vshrl.u32 %v392, 7
    %v394 = vsub.s32 0, %v393
    %v395 = vrot.slane %v390, %v394
    %v477 = vunpack.c.l.b16 %v310
    %v478 = vunpack.c.l.b16 %v311
    %v479 = vunpack.c.l.b16 %v312
    %v480 = vunpack.c.l.b16 %v313
    %v481 = vunpack.c.l.b16 %v314
    %v482 = vunpack.c.l.b16 %v315
    %v483 = vunpack.c.l.b16 %v316
    %v484 = vunpack.c.l.b16 %v317
    %v485 = vunpack.c.l.b16 %v318
    %v486 = vunpack.c.l.b16 %v319
    %v487 = vunpack.c.l.b16 %v320
    %v488 = vunpack.c.l.b16 %v321
    %v489 = vunpack.c.l.b16 %v322
    %v490 = vunpack.c.l.b16 %v323
    %v491 = vunpack.c.l.b16 %v324
    %v492 = vunpack.c.l.b16 %v325
    %v493 = vunpack.c.l.b16 %v326
    %v494 = vunpack.c.l.b16 %v327
    %v495 = vunpack.c.l.b16 %v328
    %v496 = vunpack.c.l.b16 %v329
    %v497 = vunpack.c.l.b16 %v330
    %v498 = vunpack.c.l.b16 %v331
    %v499 = vunpack.c.l.b16 %v332
    %v500 = vunpack.c.l.b16 %v333
    %v501 = vunpack.c.l.b16 %v334
    %v502 = vunpack.c.l.b16 %v335
    %v503 = vunpack.c.l.b16 %v336
    %v504 = vunpack.c.l.b16 %v337
    %v505 = vunpack.c.l.b16 %v338
    %v506 = vunpack.c.l.b16 %v339
    %v507 = vunpack.c.l.b16 %v340
    %v508 = vunpack.c.l.b16 %v341
    %v509 = vunpack.c.l.b16 %v342
    %v510 = vunpack.c.l.b16 %v343
    %v511 = vunpack.c.l.b16 %v344
    %v512 = vunpack.c.l.b16 %v345
    %v513 = vunpack.c.l.b16 %v346
    %v514 = vunpack.c.l.b16 %v347
    %v515 = vunpack.c.l.b16 %v348
    %v516 = vunpack.c.l.b16 %v349
    %v517 = vunpack.c.l.b16 %v350
    %v518 = vunpack.c.l.b16 %v351
    %v519 = vunpack.c.l.b16 %v352
    %v520 = vunpack.c.l.b16 %v353
    %v521 = vunpack.c.l.b16 %v354
    %v522 = vunpack.c.l.b16 %v355
    %v523 = vunpack.c.l.b16 %v356
    %v524 = vunpack.c.l.b16 %v357
    %v525 = vunpack.c.l.b16 %v358
    %v526 = vunpack.c.l.b16 %v359
    %v527 = vunpack.c.l.b16 %v360
    %v528 = vunpack.c.l.b16 %v361
    %v529 = vunpack.c.l.b16 %v362
    %v530 = vunpack.c.l.b16 %v363
    %v531 = vunpack.c.l.b16 %v364
    %v532 = vunpack.c.l.b16 %v365
    %v533 = vunpack.c.l.b16 %v366
    %v534 = vunpack.c.l.b16 %v367
    %v535 = vunpack.c.l.b16 %v368
    %v536 = vunpack.c.l.b16 %v369
    %v537 = vunpack.c.l.b16 %v370
    %v538 = vunpack.c.l.b16 %v371
    %v539 = vunpack.c.l.b16 %v372
    %v540 = vunpack.c.l.b16 %v373
    %v541 = vunpack.c.l.b16 %v374
    %v542 = vunpack.c.l.b16 %v375
    %v543 = vunpack.c.l.b16 %v376
    %v544 = vunpack.c.l.b16 %v377
    %v545 = vunpack.c.l.b16 %v378
    %v546 = vunpack.c.l.b16 %v379
    %v547 = vunpack.c.l.b16 %v380
    %v548 = vunpack.c.l.b16 %v381
    %v549 = vunpack.c.l.b16 %v382
    %v550 = vunpack.c.l.b16 %v383
    %v551 = vunpack.c.l.b16 %v384
    %v552 = vunpack.c.l.b16 %v385
    %v553 = vunpack.c.l.b16 %v386
    %v554 = vunpack.c.l.b16 %v387
    %v555 = vunpack.c.l.b16 %v388
    %v556 = vunpack.c.l.b16 %v389
    %v557 = vpack.c.b16 %v478, %v477
    %v558 = vpack.c.b16 %v480, %v479
    %v559 = vpack.c.b16 %v482, %v481
    %v560 = vpack.c.b16 %v484, %v483
    %v561 = vpack.c.b16 %v486, %v485
    %v562 = vpack.c.b16 %v488, %v487
    %v563 = vpack.c.b16 %v490, %v489
    %v564 = vpack.c.b16 %v492, %v491
    %v565 = vpack.c.b16 %v494, %v493
    %v566 = vpack.c.b16 %v496, %v495
    %v567 = vpack.c.b16 %v498, %v497
    %v568 = vpack.c.b16 %v500, %v499
    %v569 = vpack.c.b16 %v502, %v501
    %v570 = vpack.c.b16 %v504, %v503
    %v571 = vpack.c.b16 %v506, %v505
    %v572 = vpack.c.b16 %v508, %v507
    %v573 = vpack.c.b16 %v510, %v509
    %v574 = vpack.c.b16 %v512, %v511
    %v575 = vpack.c.b16 %v514, %v513
    %v576 = vpack.c.b16 %v516, %v515
    %v577 = vpack.c.b16 %v518, %v517
    %v578 = vpack.c.b16 %v520, %v519
    %v579 = vpack.c.b16 %v522, %v521
    %v580 = vpack.c.b16 %v524, %v523
    %v581 = vpack.c.b16 %v526, %v525
    %v582 = vpack.c.b16 %v528, %v527
    %v583 = vpack.c.b16 %v530, %v529
    %v584 = vpack.c.b16 %v532, %v531
    %v585 = vpack.c.b16 %v534, %v533
    %v586 = vpack.c.b16 %v536, %v535
    %v587 = vpack.c.b16 %v538, %v537
    %v588 = vpack.c.b16 %v540, %v539
    %v589 = vpack.c.b16 %v542, %v541
    %v590 = vpack.c.b16 %v544, %v543
    %v591 = vpack.c.b16 %v546, %v545
    %v592 = vpack.c.b16 %v548, %v547
    %v593 = vpack.c.b16 %v550, %v549
    %v594 = vpack.c.b16 %v552, %v551
    %v595 = vpack.c.b16 %v554, %v553
    %v596 = vpack.c.b16 %v556, %v555
    %637 = vmatprep.subr.bf16.mxu0 0
    %638 = vmatpush1.bf16.msra.mxu0 %v557
    %639 = vmatprep.subr.bf16.mxu0 0
    %640 = vmatpush1.bf16.msra.mxu0 %v558
    %641 = vmatprep.subr.bf16.mxu0 0
    %642 = vmatpush1.bf16.msra.mxu0 %v559
    %643 = vmatprep.subr.bf16.mxu0 0
    %644 = vmatpush1.bf16.msra.mxu0 %v560
    %645 = vmatprep.subr.bf16.mxu0 0
    %646 = vmatpush1.bf16.msra.mxu0 %v561
    %647 = vmatprep.subr.bf16.mxu0 0
    %648 = vmatpush1.bf16.msra.mxu0 %v562
    %649 = vmatprep.subr.bf16.mxu0 0
    %650 = vmatpush1.bf16.msra.mxu0 %v563
    %651 = vmatprep.subr.bf16.mxu0 0
    %652 = vmatpush1.bf16.msra.mxu0 %v564
    %653 = vmatprep.subr.bf16.mxu0 0
    %654 = vmatpush1.bf16.msra.mxu0 %v565
    %655 = vmatprep.subr.bf16.mxu0 0
    %656 = vmatpush1.bf16.msra.mxu0 %v566
    %657 = vmatprep.subr.bf16.mxu0 0
    %658 = vmatpush1.bf16.msra.mxu0 %v567
    %659 = vmatprep.subr.bf16.mxu0 0
    %660 = vmatpush1.bf16.msra.mxu0 %v568
    %661 = vmatprep.subr.bf16.mxu0 0
    %662 = vmatpush1.bf16.msra.mxu0 %v569
    %663 = vmatprep.subr.bf16.mxu0 0
    %664 = vmatpush1.bf16.msra.mxu0 %v570
    %665 = vmatprep.subr.bf16.mxu0 0
    %666 = vmatpush1.bf16.msra.mxu0 %v571
    %667 = vmatprep.subr.bf16.mxu0 0
    %668 = vmatpush1.bf16.msra.mxu0 %v572
    %669 = vmatprep.mubr.bf16.mxu0 %v282
    %670 = vmatmul.mubr.bf16.gmra.mrb[0].mxu0 %v274
    %v671 = vpop.f32.mrb[0].mxu0
    %v672 = vadd.f32 %v395, %v671
    %v673 = vpop.f32.mrb[0].mxu0
    %v674 = vpop.f32.mrb[0].mxu0
    %v675 = vadd.f32 %v395, %v674
    %v676 = vpop.f32.mrb[0].mxu0
    %677 = vmatprep.mubr.bf16.mxu0 %v283
    %678 = vmatmul.mubr.bf16.gmra.mrb[0].mxu0 %v275
    %v679 = vpop.f32.mrb[0].mxu0
    %v680 = vadd.f32 %v395, %v679
    %v681 = vpop.f32.mrb[0].mxu0
    %v682 = vpop.f32.mrb[0].mxu0
    %v683 = vadd.f32 %v395, %v682
    %v684 = vpop.f32.mrb[0].mxu0
    %685 = vdwg.mxu0
    %686 = vmatprep.subr.bf16.mxu0 0
    %687 = vmatpush1.bf16.msra.mxu0 %v573
    %688 = vmatprep.subr.bf16.mxu0 0
    %689 = vmatpush1.bf16.msra.mxu0 %v574
    %690 = vmatprep.subr.bf16.mxu0 0
    %691 = vmatpush1.bf16.msra.mxu0 %v575
    %692 = vmatprep.subr.bf16.mxu0 0
    %693 = vmatpush1.bf16.msra.mxu0 %v576
    %694 = vmatprep.subr.bf16.mxu0 0
    %695 = vmatpush1.bf16.msra.mxu0 %v577
    %696 = vmatprep.subr.bf16.mxu0 0
    %697 = vmatpush1.bf16.msra.mxu0 %v578
    %698 = vmatprep.subr.bf16.mxu0 0
    %699 = vmatpush1.bf16.msra.mxu0 %v579
    %700 = vmatprep.subr.bf16.mxu0 0
    %701 = vmatpush1.bf16.msra.mxu0 %v580
    %702 = vmatprep.subr.bf16.mxu0 0
    %703 = vmatpush1.bf16.msra.mxu0 %v581
    %704 = vmatprep.subr.bf16.mxu0 0
    %705 = vmatpush1.bf16.msra.mxu0 %v582
    %706 = vmatprep.subr.bf16.mxu0 0
    %707 = vmatpush1.bf16.msra.mxu0 %v583
    %708 = vmatprep.subr.bf16.mxu0 0
    %709 = vmatpush1.bf16.msra.mxu0 %v584
    %710 = vmatprep.subr.bf16.mxu0 0
    %711 = vmatpush1.bf16.msra.mxu0 %v585
    %712 = vmatprep.subr.bf16.mxu0 0
    %713 = vmatpush1.bf16.msra.mxu0 %v586
    %714 = vmatprep.subr.bf16.mxu0 0
    %715 = vmatpush1.bf16.msra.mxu0 %v587
    %716 = vmatprep.subr.bf16.mxu0 0
    %717 = vmatpush1.bf16.msra.mxu0 %v588
    %718 = vmatprep.mubr.bf16.mxu0 %v298
    %719 = vmatmul.mubr.bf16.gmra.mrb[0].mxu0 %v290
    %v720 = vpop.f32.mrb[0].mxu0
    %v721 = vadd.f32 %v672, %v720
    %v722 = vpop.f32.mrb[0].mxu0
    %v723 = vpop.f32.mrb[0].mxu0
    %v724 = vadd.f32 %v675, %v723
    %v725 = vpop.f32.mrb[0].mxu0
    %726 = vmatprep.mubr.bf16.mxu0 %v299
    %727 = vmatmul.mubr.bf16.gmra.mrb[0].mxu0 %v291
    %v728 = vpop.f32.mrb[0].mxu0
    %v729 = vadd.f32 %v680, %v728
    %v730 = vpop.f32.mrb[0].mxu0
    %v731 = vpop.f32.mrb[0].mxu0
    %v732 = vadd.f32 %v683, %v731
    %v733 = vpop.f32.mrb[0].mxu0
    %734 = vdwg.mxu0
    %735 = vmatprep.subr.bf16.mxu0 0
    %736 = vmatpush1.bf16.msra.mxu0 %v589
    %737 = vmatprep.subr.bf16.mxu0 0
    %738 = vmatpush1.bf16.msra.mxu0 %v590
    %739 = vmatprep.subr.bf16.mxu0 0
    %740 = vmatpush1.bf16.msra.mxu0 %v591
    %741 = vmatprep.subr.bf16.mxu0 0
    %742 = vmatpush1.bf16.msra.mxu0 %v592
    %743 = vmatprep.subr.bf16.mxu0 0
    %744 = vmatpush1.bf16.msra.mxu0 %v593
    %745 = vmatprep.subr.bf16.mxu0 0
    %746 = vmatpush1.bf16.msra.mxu0 %v594
    %747 = vmatprep.subr.bf16.mxu0 0
    %748 = vmatpush1.bf16.msra.mxu0 %v595
    %749 = vmatprep.subr.bf16.mxu0 0
    %750 = vmatpush1.bf16.msra.mxu0 %v596
    %751 = vmatprep.subr.bf16.mxu0 0
    %752 = vmatpush1.bf16.msra.mxu0 0
    %753 = vmatprep.subr.bf16.mxu0 0
    %754 = vmatpush1.bf16.msra.mxu0 0
    %755 = vmatprep.subr.bf16.mxu0 0
    %756 = vmatpush1.bf16.msra.mxu0 0
    %757 = vmatprep.subr.bf16.mxu0 0
    %758 = vmatpush1.bf16.msra.mxu0 0
    %759 = vmatprep.subr.bf16.mxu0 0
    %760 = vmatpush1.bf16.msra.mxu0 0
    %761 = vmatprep.subr.bf16.mxu0 0
    %762 = vmatpush1.bf16.msra.mxu0 0
    %763 = vmatprep.subr.bf16.mxu0 0
    %764 = vmatpush1.bf16.msra.mxu0 0
    %765 = vmatprep.subr.bf16.mxu0 0
    %766 = vmatpush1.bf16.msra.mxu0 0
    %767 = vmatprep.mubr.bf16.mxu0 0
    %768 = vmatmul.mubr.bf16.gmra.mrb[0].mxu0 %v306
    %v769 = vpop.f32.mrb[0].mxu0
    %v770 = vadd.f32 %v721, %v769
    %v771 = vpop.f32.mrb[0].mxu0
    %v772 = vpop.f32.mrb[0].mxu0
    %v773 = vadd.f32 %v724, %v772
    %v774 = vpop.f32.mrb[0].mxu0
    %775 = vmatprep.mubr.bf16.mxu0 0
    %776 = vmatmul.mubr.bf16.gmra.mrb[0].mxu0 %v307
    %v777 = vpop.f32.mrb[0].mxu0
    %v778 = vadd.f32 %v729, %v777
    %v779 = vpop.f32.mrb[0].mxu0
    %v780 = vpop.f32.mrb[0].mxu0
    %v781 = vadd.f32 %v732, %v780
    %v782 = vpop.f32.mrb[0].mxu0
    %783 = vdwg.mxu0
    %v784 = vmax.f32 %v770, 0.0
    %v785 = vmax.f32 %v773, 0.0
    %v786 = vmax.f32 %v778, 0.0
    %v787 = vmax.f32 %v781, 0.0
    %v788 = vpack.c.bf16 %v785, %v784
    %v789 = vpack.c.bf16 %v787, %v786
    %v792 = vunpack.c.l.b16 %v788
    %v793 = vunpack.c.h.b16 %v788
    %v794 = vunpack.c.l.b16 %v789
    %v795 = vunpack.c.h.b16 %v789
    %v796 = vpack.c.b16 %v792, %v792
    %v797 = vpack.c.b16 %v793, %v793
    %v798 = vpack.c.b16 %v794, %v794
    %v799 = vpack.c.b16 %v795, %v795
    %v800 = vrot.slane %v796, 7
    %v801 = vrot.slane %v800, 4
    %v802 = vrot.slane %v797, 7
    %v803 = vsel %vm89, %v801, %v802
    %v804 = vrot.slane %v802, 4
    %v805 = vrot.slane %v798, 7
    %v806 = vrot.slane %v805, 4
    %v807 = vrot.slane %v799, 7
    %v808 = vsel %vm89, %v806, %v807
    %v809 = vrot.slane %v807, 4
    %816 = vst [vmem:[#allocation3] sm:$0xe] %v800
    %817 = vst [vmem:[#allocation3 + $0x4] sm:$0xf] %v803
    %818 = vst [vmem:[#allocation3 + $0x8] sm:$0x1] %v804
    %819 = vst [vmem:[#allocation3 + $0xc] sm:$0xe] %v805
    %820 = vst [vmem:[#allocation3 + $0x10] sm:$0xf] %v808
    %821 = vst [vmem:[#allocation3 + $0x14] sm:$0x1] %v809
    %v822 = vld [vmem:[#allocation3] sm:$0xf]
    %v823 = vld [vmem:[#allocation3 + $0x4] sm:$0xf]
    %v824 = vld [vmem:[#allocation3 + $0xc] sm:$0xf]
    %v825 = vld [vmem:[#allocation3 + $0x10] sm:$0xf]
    %v826 = vld [vmem:[#allocation3 + $0x8] sm:$0x1]
    %v827 = vld [vmem:[#allocation3 + $0x14] sm:$0x1]
    %v829 = vshrl.u32 %v822, 16
    %v831 = vrot.slane %v829, 4
    %v832 = vshll.u32 %v822, 16
    %v834 = vrot.slane %v832, 5
    %v835 = vor.u32 %v831, %v834
    %v836 = vrot.slane %v835, 4
    %v838 = vshll.u32 %v823, 16
    %v840 = vrot.slane %v838, 5
    %v841 = vsel %vm120, %v836, %v840
    %v842 = vshrl.u32 %v823, 16
    %v844 = vrot.slane %v842, 4
    %v845 = vor.u32 %v844, %v840
    %v846 = vrot.slane %v845, 4
    %v848 = vshll.u32 %v826, 16
    %v850 = vrot.slane %v848, 5
    %v851 = vsel %vm120, %v846, %v850
    %v853 = vshrl.u32 %v824, 16
    %v855 = vrot.slane %v853, 4
    %v856 = vshll.u32 %v824, 16
    %v858 = vrot.slane %v856, 5
    %v859 = vor.u32 %v855, %v858
    %v860 = vrot.slane %v859, 4
    %v862 = vshll.u32 %v825, 16
    %v864 = vrot.slane %v862, 5
    %v865 = vsel %vm120, %v860, %v864
    %v866 = vshrl.u32 %v825, 16
    %v868 = vrot.slane %v866, 4
    %v869 = vor.u32 %v868, %v864
    %v870 = vrot.slane %v869, 4
    %v872 = vshll.u32 %v827, 16
    %v874 = vrot.slane %v872, 5
    %v875 = vsel %vm120, %v870, %v874
    %v876 = vld [vmem:[#allocation3] sm:$0xe]
    %v877 = vld [vmem:[#allocation3 + $0xc] sm:$0xe]
    %v884 = vrot.slane %v876, 5
    %v885 = vrot.slane %v884, 4
    %v886 = vrot.slane %v823, 5
    %v887 = vsel %vm179, %v885, %v886
    %v888 = vrot.slane %v886, 4
    %v889 = vrot.slane %v826, 5
    %v890 = vsel %vm179, %v888, %v889
    %v891 = vrot.slane %v877, 5
    %v892 = vrot.slane %v891, 4
    %v893 = vrot.slane %v825, 5
    %v894 = vsel %vm179, %v892, %v893
    %v895 = vrot.slane %v893, 4
    %v896 = vrot.slane %v827, 5
    %v897 = vsel %vm179, %v895, %v896
    %v898 = vld [vmem:[#allocation3 + $0x8] sm:$0x3]
    %v899 = vld [vmem:[#allocation3 + $0x14] sm:$0x3]
    %v901 = vshrl.u32 %v876, 16
    %v903 = vrot.slane %v901, 5
    %v904 = vshll.u32 %v876, 16
    %v906 = vrot.slane %v904, 6
    %v907 = vor.u32 %v903, %v906
    %v908 = vrot.slane %v907, 4
    %v909 = vrot.slane %v842, 5
    %v910 = vrot.slane %v838, 6
    %v911 = vor.u32 %v909, %v910
    %v912 = vsel %vm198, %v908, %v911
    %v913 = vrot.slane %v911, 4
    %v915 = vshrl.u32 %v898, 16
    %v917 = vrot.slane %v915, 5
    %v918 = vshll.u32 %v898, 16
    %v920 = vrot.slane %v918, 6
    %v921 = vor.u32 %v917, %v920
    %v922 = vsel %vm198, %v913, %v921
    %v924 = vshrl.u32 %v877, 16
    %v926 = vrot.slane %v924, 5
    %v927 = vshll.u32 %v877, 16
    %v929 = vrot.slane %v927, 6
    %v930 = vor.u32 %v926, %v929
    %v931 = vrot.slane %v930, 4
    %v932 = vrot.slane %v866, 5
    %v933 = vrot.slane %v862, 6
    %v934 = vor.u32 %v932, %v933
    %v935 = vsel %vm198, %v931, %v934
    %v936 = vrot.slane %v934, 4
    %v938 = vshrl.u32 %v899, 16
    %v940 = vrot.slane %v938, 5
    %v941 = vshll.u32 %v899, 16
    %v943 = vrot.slane %v941, 6
    %v944 = vor.u32 %v940, %v943
    %v945 = vsel %vm198, %v936, %v944
    %v946 = vld [vmem:[#allocation3] sm:$0xc]
    %v947 = vld [vmem:[#allocation3 + $0xc] sm:$0xc]
    %v952 = vrot.slane %v946, 6
    %v953 = vrot.slane %v952, 4
    %v954 = vrot.slane %v823, 6
    %v955 = vsel %vm253, %v953, %v954
    %v956 = vrot.slane %v954, 4
    %v957 = vrot.slane %v898, 6
    %v958 = vsel %vm253, %v956, %v957
    %v959 = vrot.slane %v947, 6
    %v960 = vrot.slane %v959, 4
    %v961 = vrot.slane %v825, 6
    %v962 = vsel %vm253, %v960, %v961
    %v963 = vrot.slane %v961, 4
    %v964 = vrot.slane %v899, 6
    %v965 = vsel %vm253, %v963, %v964
    %v968 = vunpack.c.l.b16 %v822
    %v969 = vunpack.c.l.b16 %v823
    %v970 = vunpack.c.l.b16 %v824
    %v971 = vunpack.c.l.b16 %v825
    %v972 = vpack.c.b16 %v969, %v968
    %v973 = vpack.c.b16 %v971, %v970
    %v976 = vunpack.c.l.b16 %v841
    %v977 = vunpack.c.l.b16 %v851
    %v978 = vunpack.c.l.b16 %v865
    %v979 = vunpack.c.l.b16 %v875
    %v980 = vpack.c.b16 %v977, %v976
    %v981 = vpack.c.b16 %v979, %v978
    %v984 = vunpack.c.l.b16 %v887
    %v985 = vunpack.c.l.b16 %v890
    %v986 = vunpack.c.l.b16 %v894
    %v987 = vunpack.c.l.b16 %v897
    %v988 = vpack.c.b16 %v985, %v984
    %v989 = vpack.c.b16 %v987, %v986
    %v992 = vunpack.c.l.b16 %v912
    %v993 = vunpack.c.l.b16 %v922
    %v994 = vunpack.c.l.b16 %v935
    %v995 = vunpack.c.l.b16 %v945
    %v996 = vpack.c.b16 %v993, %v992
    %v997 = vpack.c.b16 %v995, %v994
    %v1000 = vunpack.c.l.b16 %v955
    %v1001 = vunpack.c.l.b16 %v958
    %v1002 = vunpack.c.l.b16 %v962
    %v1003 = vunpack.c.l.b16 %v965
    %v1004 = vpack.c.b16 %v1001, %v1000
    %v1005 = vpack.c.b16 %v1003, %v1002
    %v1008 = vld [vmem:[#allocation9] sm:$0xf]
    %v1009 = vld [vmem:[#allocation9 + $0x4] sm:$0xf]
    %v1010 = vld [vmem:[#allocation9 + $0x8] sm:$0xf]
    %v1011 = vld [vmem:[#allocation9 + $0xc] sm:$0xf]
    %v1012 = vld [vmem:[#allocation9 + $0x10] sm:$0xf]
    %v1013 = vld [vmem:[#allocation9 + $0x14] sm:$0xf]
    %v1014 = vld [vmem:[#allocation9 + $0x18] sm:$0xf]
    %v1015 = vld [vmem:[#allocation9 + $0x1c] sm:$0xf]
    %v1016 = vld [vmem:[#allocation9 + $0x20] sm:$0xf]
    %v1017 = vld [vmem:[#allocation9 + $0x24] sm:$0xf]
    %v1018 = vld [vmem:[#allocation9 + $0x28] sm:$0xf]
    %v1019 = vld [vmem:[#allocation9 + $0x2c] sm:$0xf]
    %v1020 = vld [vmem:[#allocation9 + $0x30] sm:$0xf]
    %v1021 = vld [vmem:[#allocation9 + $0x34] sm:$0xf]
    %v1022 = vld [vmem:[#allocation9 + $0x38] sm:$0xf]
    %v1023 = vld [vmem:[#allocation9 + $0x3c] sm:$0xf]
    %v1024 = vld [vmem:[#allocation9 + $0x40] sm:$0xf]
    %v1025 = vld [vmem:[#allocation9 + $0x44] sm:$0xf]
    %v1026 = vld [vmem:[#allocation9 + $0x48] sm:$0xf]
    %v1027 = vld [vmem:[#allocation9 + $0x4c] sm:$0xf]
    %v1028 = vld [vmem:[#allocation9 + $0x50] sm:$0xf]
    %v1029 = vld [vmem:[#allocation9 + $0x54] sm:$0xf]
    %v1030 = vld [vmem:[#allocation9 + $0x58] sm:$0xf]
    %v1031 = vld [vmem:[#allocation9 + $0x5c] sm:$0xf]
    %v1032 = vld [vmem:[#allocation9 + $0x60] sm:$0xf]
    %v1033 = vld [vmem:[#allocation9 + $0x64] sm:$0xf]
    %v1034 = vld [vmem:[#allocation9 + $0x68] sm:$0xf]
    %v1035 = vld [vmem:[#allocation9 + $0x6c] sm:$0xf]
    %v1036 = vld [vmem:[#allocation9 + $0x70] sm:$0xf]
    %v1037 = vld [vmem:[#allocation9 + $0x74] sm:$0xf]
    %v1038 = vld [vmem:[#allocation9 + $0x78] sm:$0xf]
    %v1039 = vld [vmem:[#allocation9 + $0x7c] sm:$0xf]
    %v1040 = vld [vmem:[#allocation9 + $0x80] sm:$0xf]
    %v1041 = vld [vmem:[#allocation9 + $0x84] sm:$0xf]
    %v1042 = vld [vmem:[#allocation9 + $0x88] sm:$0xf]
    %v1043 = vld [vmem:[#allocation9 + $0x8c] sm:$0xf]
    %v1044 = vld [vmem:[#allocation9 + $0x90] sm:$0xf]
    %v1045 = vld [vmem:[#allocation9 + $0x94] sm:$0xf]
    %v1046 = vld [vmem:[#allocation9 + $0x98] sm:$0xf]
    %v1047 = vld [vmem:[#allocation9 + $0x9c] sm:$0xf]
    %v1048 = vld [vmem:[#allocation9 + $0xa0] sm:$0xf]
    %v1049 = vld [vmem:[#allocation9 + $0xa4] sm:$0xf]
    %v1050 = vld [vmem:[#allocation9 + $0xa8] sm:$0xf]
    %v1051 = vld [vmem:[#allocation9 + $0xac] sm:$0xf]
    %v1052 = vld [vmem:[#allocation9 + $0xb0] sm:$0xf]
    %v1053 = vld [vmem:[#allocation9 + $0xb4] sm:$0xf]
    %v1054 = vld [vmem:[#allocation9 + $0xb8] sm:$0xf]
    %v1055 = vld [vmem:[#allocation9 + $0xbc] sm:$0xf]
    %v1056 = vld [vmem:[#allocation9 + $0xc0] sm:$0xf]
    %v1057 = vld [vmem:[#allocation9 + $0xc4] sm:$0xf]
    %v1058 = vld [vmem:[#allocation9 + $0xc8] sm:$0xf]
    %v1059 = vld [vmem:[#allocation9 + $0xcc] sm:$0xf]
    %v1060 = vld [vmem:[#allocation9 + $0xd0] sm:$0xf]
    %v1061 = vld [vmem:[#allocation9 + $0xd4] sm:$0xf]
    %v1062 = vld [vmem:[#allocation9 + $0xd8] sm:$0xf]
    %v1063 = vld [vmem:[#allocation9 + $0xdc] sm:$0xf]
    %v1064 = vld [vmem:[#allocation9 + $0xe0] sm:$0xf]
    %v1065 = vld [vmem:[#allocation9 + $0xe4] sm:$0xf]
    %v1066 = vld [vmem:[#allocation9 + $0xe8] sm:$0xf]
    %v1067 = vld [vmem:[#allocation9 + $0xec] sm:$0xf]
    %v1068 = vld [vmem:[#allocation9 + $0xf0] sm:$0xf]
    %v1069 = vld [vmem:[#allocation9 + $0xf4] sm:$0xf]
    %v1070 = vld [vmem:[#allocation9 + $0xf8] sm:$0xf]
    %v1071 = vld [vmem:[#allocation9 + $0xfc] sm:$0xf]
    %v1072 = vld [vmem:[#allocation9 + $0x100] sm:$0xf]
    %v1073 = vld [vmem:[#allocation9 + $0x104] sm:$0xf]
    %v1074 = vld [vmem:[#allocation9 + $0x108] sm:$0xf]
    %v1075 = vld [vmem:[#allocation9 + $0x10c] sm:$0xf]
    %v1076 = vld [vmem:[#allocation9 + $0x110] sm:$0xf]
    %v1077 = vld [vmem:[#allocation9 + $0x114] sm:$0xf]
    %v1078 = vld [vmem:[#allocation9 + $0x118] sm:$0xf]
    %v1079 = vld [vmem:[#allocation9 + $0x11c] sm:$0xf]
    %v1080 = vld [vmem:[#allocation9 + $0x120] sm:$0xf]
    %v1081 = vld [vmem:[#allocation9 + $0x124] sm:$0xf]
    %v1082 = vld [vmem:[#allocation9 + $0x128] sm:$0xf]
    %v1083 = vld [vmem:[#allocation9 + $0x12c] sm:$0xf]
    %v1084 = vld [vmem:[#allocation9 + $0x130] sm:$0xf]
    %v1085 = vld [vmem:[#allocation9 + $0x134] sm:$0xf]
    %v1086 = vld [vmem:[#allocation9 + $0x138] sm:$0xf]
    %v1087 = vld [vmem:[#allocation9 + $0x13c] sm:$0xf]
    %v1088 = vld [vmem:[%s4] sm:$0x1]
    %v1090 = vlaneseq
    %v1091 = vshrl.u32 %v1090, 7
    %v1092 = vsub.s32 0, %v1091
    %v1093 = vrot.slane %v1088, %v1092
    %v1175 = vunpack.c.l.b16 %v1008
    %v1176 = vunpack.c.l.b16 %v1009
    %v1177 = vunpack.c.l.b16 %v1010
    %v1178 = vunpack.c.l.b16 %v1011
    %v1179 = vunpack.c.l.b16 %v1012
    %v1180 = vunpack.c.l.b16 %v1013
    %v1181 = vunpack.c.l.b16 %v1014
    %v1182 = vunpack.c.l.b16 %v1015
    %v1183 = vunpack.c.l.b16 %v1016
    %v1184 = vunpack.c.l.b16 %v1017
    %v1185 = vunpack.c.l.b16 %v1018
    %v1186 = vunpack.c.l.b16 %v1019
    %v1187 = vunpack.c.l.b16 %v1020
    %v1188 = vunpack.c.l.b16 %v1021
    %v1189 = vunpack.c.l.b16 %v1022
    %v1190 = vunpack.c.l.b16 %v1023
    %v1191 = vunpack.c.l.b16 %v1024
    %v1192 = vunpack.c.l.b16 %v1025
    %v1193 = vunpack.c.l.b16 %v1026
    %v1194 = vunpack.c.l.b16 %v1027
    %v1195 = vunpack.c.l.b16 %v1028
    %v1196 = vunpack.c.l.b16 %v1029
    %v1197 = vunpack.c.l.b16 %v1030
    %v1198 = vunpack.c.l.b16 %v1031
    %v1199 = vunpack.c.l.b16 %v1032
    %v1200 = vunpack.c.l.b16 %v1033
    %v1201 = vunpack.c.l.b16 %v1034
    %v1202 = vunpack.c.l.b16 %v1035
    %v1203 = vunpack.c.l.b16 %v1036
    %v1204 = vunpack.c.l.b16 %v1037
    %v1205 = vunpack.c.l.b16 %v1038
    %v1206 = vunpack.c.l.b16 %v1039
    %v1207 = vunpack.c.l.b16 %v1040
    %v1208 = vunpack.c.l.b16 %v1041
    %v1209 = vunpack.c.l.b16 %v1042
    %v1210 = vunpack.c.l.b16 %v1043
    %v1211 = vunpack.c.l.b16 %v1044
    %v1212 = vunpack.c.l.b16 %v1045
    %v1213 = vunpack.c.l.b16 %v1046
    %v1214 = vunpack.c.l.b16 %v1047
    %v1215 = vunpack.c.l.b16 %v1048
    %v1216 = vunpack.c.l.b16 %v1049
    %v1217 = vunpack.c.l.b16 %v1050
    %v1218 = vunpack.c.l.b16 %v1051
    %v1219 = vunpack.c.l.b16 %v1052
    %v1220 = vunpack.c.l.b16 %v1053
    %v1221 = vunpack.c.l.b16 %v1054
    %v1222 = vunpack.c.l.b16 %v1055
    %v1223 = vunpack.c.l.b16 %v1056
    %v1224 = vunpack.c.l.b16 %v1057
    %v1225 = vunpack.c.l.b16 %v1058
    %v1226 = vunpack.c.l.b16 %v1059
    %v1227 = vunpack.c.l.b16 %v1060
    %v1228 = vunpack.c.l.b16 %v1061
    %v1229 = vunpack.c.l.b16 %v1062
    %v1230 = vunpack.c.l.b16 %v1063
    %v1231 = vunpack.c.l.b16 %v1064
    %v1232 = vunpack.c.l.b16 %v1065
    %v1233 = vunpack.c.l.b16 %v1066
    %v1234 = vunpack.c.l.b16 %v1067
    %v1235 = vunpack.c.l.b16 %v1068
    %v1236 = vunpack.c.l.b16 %v1069
    %v1237 = vunpack.c.l.b16 %v1070
    %v1238 = vunpack.c.l.b16 %v1071
    %v1239 = vunpack.c.l.b16 %v1072
    %v1240 = vunpack.c.l.b16 %v1073
    %v1241 = vunpack.c.l.b16 %v1074
    %v1242 = vunpack.c.l.b16 %v1075
    %v1243 = vunpack.c.l.b16 %v1076
    %v1244 = vunpack.c.l.b16 %v1077
    %v1245 = vunpack.c.l.b16 %v1078
    %v1246 = vunpack.c.l.b16 %v1079
    %v1247 = vunpack.c.l.b16 %v1080
    %v1248 = vunpack.c.l.b16 %v1081
    %v1249 = vunpack.c.l.b16 %v1082
    %v1250 = vunpack.c.l.b16 %v1083
    %v1251 = vunpack.c.l.b16 %v1084
    %v1252 = vunpack.c.l.b16 %v1085
    %v1253 = vunpack.c.l.b16 %v1086
    %v1254 = vunpack.c.l.b16 %v1087
    %v1255 = vpack.c.b16 %v1176, %v1175
    %v1256 = vpack.c.b16 %v1178, %v1177
    %v1257 = vpack.c.b16 %v1180, %v1179
    %v1258 = vpack.c.b16 %v1182, %v1181
    %v1259 = vpack.c.b16 %v1184, %v1183
    %v1260 = vpack.c.b16 %v1186, %v1185
    %v1261 = vpack.c.b16 %v1188, %v1187
    %v1262 = vpack.c.b16 %v1190, %v1189
    %v1263 = vpack.c.b16 %v1192, %v1191
    %v1264 = vpack.c.b16 %v1194, %v1193
    %v1265 = vpack.c.b16 %v1196, %v1195
    %v1266 = vpack.c.b16 %v1198, %v1197
    %v1267 = vpack.c.b16 %v1200, %v1199
    %v1268 = vpack.c.b16 %v1202, %v1201
    %v1269 = vpack.c.b16 %v1204, %v1203
    %v1270 = vpack.c.b16 %v1206, %v1205
    %v1271 = vpack.c.b16 %v1208, %v1207
    %v1272 = vpack.c.b16 %v1210, %v1209
    %v1273 = vpack.c.b16 %v1212, %v1211
    %v1274 = vpack.c.b16 %v1214, %v1213
    %v1275 = vpack.c.b16 %v1216, %v1215
    %v1276 = vpack.c.b16 %v1218, %v1217
    %v1277 = vpack.c.b16 %v1220, %v1219
    %v1278 = vpack.c.b16 %v1222, %v1221
    %v1279 = vpack.c.b16 %v1224, %v1223
    %v1280 = vpack.c.b16 %v1226, %v1225
    %v1281 = vpack.c.b16 %v1228, %v1227
    %v1282 = vpack.c.b16 %v1230, %v1229
    %v1283 = vpack.c.b16 %v1232, %v1231
    %v1284 = vpack.c.b16 %v1234, %v1233
    %v1285 = vpack.c.b16 %v1236, %v1235
    %v1286 = vpack.c.b16 %v1238, %v1237
    %v1287 = vpack.c.b16 %v1240, %v1239
    %v1288 = vpack.c.b16 %v1242, %v1241
    %v1289 = vpack.c.b16 %v1244, %v1243
    %v1290 = vpack.c.b16 %v1246, %v1245
    %v1291 = vpack.c.b16 %v1248, %v1247
    %v1292 = vpack.c.b16 %v1250, %v1249
    %v1293 = vpack.c.b16 %v1252, %v1251
    %v1294 = vpack.c.b16 %v1254, %v1253
    %1335 = vmatprep.subr.bf16.mxu0 0
    %1336 = vmatpush1.bf16.msra.mxu0 %v1255
    %1337 = vmatprep.subr.bf16.mxu0 0
    %1338 = vmatpush1.bf16.msra.mxu0 %v1256
    %1339 = vmatprep.subr.bf16.mxu0 0
    %1340 = vmatpush1.bf16.msra.mxu0 %v1257
    %1341 = vmatprep.subr.bf16.mxu0 0
    %1342 = vmatpush1.bf16.msra.mxu0 %v1258
    %1343 = vmatprep.subr.bf16.mxu0 0
    %1344 = vmatpush1.bf16.msra.mxu0 %v1259
    %1345 = vmatprep.subr.bf16.mxu0 0
    %1346 = vmatpush1.bf16.msra.mxu0 %v1260
    %1347 = vmatprep.subr.bf16.mxu0 0
    %1348 = vmatpush1.bf16.msra.mxu0 %v1261
    %1349 = vmatprep.subr.bf16.mxu0 0
    %1350 = vmatpush1.bf16.msra.mxu0 %v1262
    %1351 = vmatprep.subr.bf16.mxu0 0
    %1352 = vmatpush1.bf16.msra.mxu0 %v1263
    %1353 = vmatprep.subr.bf16.mxu0 0
    %1354 = vmatpush1.bf16.msra.mxu0 %v1264
    %1355 = vmatprep.subr.bf16.mxu0 0
    %1356 = vmatpush1.bf16.msra.mxu0 %v1265
    %1357 = vmatprep.subr.bf16.mxu0 0
    %1358 = vmatpush1.bf16.msra.mxu0 %v1266
    %1359 = vmatprep.subr.bf16.mxu0 0
    %1360 = vmatpush1.bf16.msra.mxu0 %v1267
    %1361 = vmatprep.subr.bf16.mxu0 0
    %1362 = vmatpush1.bf16.msra.mxu0 %v1268
    %1363 = vmatprep.subr.bf16.mxu0 0
    %1364 = vmatpush1.bf16.msra.mxu0 %v1269
    %1365 = vmatprep.subr.bf16.mxu0 0
    %1366 = vmatpush1.bf16.msra.mxu0 %v1270
    %1367 = vmatprep.mubr.bf16.mxu0 %v980
    %1368 = vmatmul.mubr.bf16.gmra.mrb[0].mxu0 %v972
    %v1369 = vpop.f32.mrb[0].mxu0
    %v1370 = vadd.f32 %v1093, %v1369
    %v1371 = vpop.f32.mrb[0].mxu0
    %v1372 = vpop.f32.mrb[0].mxu0
    %v1373 = vadd.f32 %v1093, %v1372
    %v1374 = vpop.f32.mrb[0].mxu0
    %1375 = vmatprep.mubr.bf16.mxu0 %v981
    %1376 = vmatmul.mubr.bf16.gmra.mrb[0].mxu0 %v973
    %v1377 = vpop.f32.mrb[0].mxu0
    %v1378 = vadd.f32 %v1093, %v1377
    %v1379 = vpop.f32.mrb[0].mxu0
    %v1380 = vpop.f32.mrb[0].mxu0
    %v1381 = vadd.f32 %v1093, %v1380
    %v1382 = vpop.f32.mrb[0].mxu0
    %1383 = vdwg.mxu0
    %1384 = vmatprep.subr.bf16.mxu0 0
    %1385 = vmatpush1.bf16.msra.mxu0 %v1271
    %1386 = vmatprep.subr.bf16.mxu0 0
    %1387 = vmatpush1.bf16.msra.mxu0 %v1272
    %1388 = vmatprep.subr.bf16.mxu0 0
    %1389 = vmatpush1.bf16.msra.mxu0 %v1273
    %1390 = vmatprep.subr.bf16.mxu0 0
    %1391 = vmatpush1.bf16.msra.mxu0 %v1274
    %1392 = vmatprep.subr.bf16.mxu0 0
    %1393 = vmatpush1.bf16.msra.mxu0 %v1275
    %1394 = vmatprep.subr.bf16.mxu0 0
    %1395 = vmatpush1.bf16.msra.mxu0 %v1276
    %1396 = vmatprep.subr.bf16.mxu0 0
    %1397 = vmatpush1.bf16.msra.mxu0 %v1277
    %1398 = vmatprep.subr.bf16.mxu0 0
    %1399 = vmatpush1.bf16.msra.mxu0 %v1278
    %1400 = vmatprep.subr.bf16.mxu0 0
    %1401 = vmatpush1.bf16.msra.mxu0 %v1279
    %1402 = vmatprep.subr.bf16.mxu0 0
    %1403 = vmatpush1.bf16.msra.mxu0 %v1280
    %1404 = vmatprep.subr.bf16.mxu0 0
    %1405 = vmatpush1.bf16.msra.mxu0 %v1281
    %1406 = vmatprep.subr.bf16.mxu0 0
    %1407 = vmatpush1.bf16.msra.mxu0 %v1282
    %1408 = vmatprep.subr.bf16.mxu0 0
    %1409 = vmatpush1.bf16.msra.mxu0 %v1283
    %1410 = vmatprep.subr.bf16.mxu0 0
    %1411 = vmatpush1.bf16.msra.mxu0 %v1284
    %1412 = vmatprep.subr.bf16.mxu0 0
    %1413 = vmatpush1.bf16.msra.mxu0 %v1285
    %1414 = vmatprep.subr.bf16.mxu0 0
    %1415 = vmatpush1.bf16.msra.mxu0 %v1286
    %1416 = vmatprep.mubr.bf16.mxu0 %v996
    %1417 = vmatmul.mubr.bf16.gmra.mrb[0].mxu0 %v988
    %v1418 = vpop.f32.mrb[0].mxu0
    %v1419 = vadd.f32 %v1370, %v1418
    %v1420 = vpop.f32.mrb[0].mxu0
    %v1421 = vpop.f32.mrb[0].mxu0
    %v1422 = vadd.f32 %v1373, %v1421
    %v1423 = vpop.f32.mrb[0].mxu0
    %1424 = vmatprep.mubr.bf16.mxu0 %v997
    %1425 = vmatmul.mubr.bf16.gmra.mrb[0].mxu0 %v989
    %v1426 = vpop.f32.mrb[0].mxu0
    %v1427 = vadd.f32 %v1378, %v1426
    %v1428 = vpop.f32.mrb[0].mxu0
    %v1429 = vpop.f32.mrb[0].mxu0
    %v1430 = vadd.f32 %v1381, %v1429
    %v1431 = vpop.f32.mrb[0].mxu0
    %1432 = vdwg.mxu0
    %1433 = vmatprep.subr.bf16.mxu0 0
    %1434 = vmatpush1.bf16.msra.mxu0 %v1287
    %1435 = vmatprep.subr.bf16.mxu0 0
    %1436 = vmatpush1.bf16.msra.mxu0 %v1288
    %1437 = vmatprep.subr.bf16.mxu0 0
    %1438 = vmatpush1.bf16.msra.mxu0 %v1289
    %1439 = vmatprep.subr.bf16.mxu0 0
    %1440 = vmatpush1.bf16.msra.mxu0 %v1290
    %1441 = vmatprep.subr.bf16.mxu0 0
    %1442 = vmatpush1.bf16.msra.mxu0 %v1291
    %1443 = vmatprep.subr.bf16.mxu0 0
    %1444 = vmatpush1.bf16.msra.mxu0 %v1292
    %1445 = vmatprep.subr.bf16.mxu0 0
    %1446 = vmatpush1.bf16.msra.mxu0 %v1293
    %1447 = vmatprep.subr.bf16.mxu0 0
    %1448 = vmatpush1.bf16.msra.mxu0 %v1294
    %1449 = vmatprep.subr.bf16.mxu0 0
    %1450 = vmatpush1.bf16.msra.mxu0 0
    %1451 = vmatprep.subr.bf16.mxu0 0
    %1452 = vmatpush1.bf16.msra.mxu0 0
    %1453 = vmatprep.subr.bf16.mxu0 0
    %1454 = vmatpush1.bf16.msra.mxu0 0
    %1455 = vmatprep.subr.bf16.mxu0 0
    %1456 = vmatpush1.bf16.msra.mxu0 0
    %1457 = vmatprep.subr.bf16.mxu0 0
    %1458 = vmatpush1.bf16.msra.mxu0 0
    %1459 = vmatprep.subr.bf16.mxu0 0
    %1460 = vmatpush1.bf16.msra.mxu0 0
    %1461 = vmatprep.subr.bf16.mxu0 0
    %1462 = vmatpush1.bf16.msra.mxu0 0
    %1463 = vmatprep.subr.bf16.mxu0 0
    %1464 = vmatpush1.bf16.msra.mxu0 0
    %1465 = vmatprep.mubr.bf16.mxu0 0
    %1466 = vmatmul.mubr.bf16.gmra.mrb[0].mxu0 %v1004
    %v1467 = vpop.f32.mrb[0].mxu0
    %v1468 = vadd.f32 %v1419, %v1467
    %v1469 = vpop.f32.mrb[0].mxu0
    %v1470 = vpop.f32.mrb[0].mxu0
    %v1471 = vadd.f32 %v1422, %v1470
    %v1472 = vpop.f32.mrb[0].mxu0
    %1473 = vmatprep.mubr.bf16.mxu0 0
    %1474 = vmatmul.mubr.bf16.gmra.mrb[0].mxu0 %v1005
    %v1475 = vpop.f32.mrb[0].mxu0
    %v1476 = vadd.f32 %v1427, %v1475
    %v1477 = vpop.f32.mrb[0].mxu0
    %v1478 = vpop.f32.mrb[0].mxu0
    %v1479 = vadd.f32 %v1430, %v1478
    %v1480 = vpop.f32.mrb[0].mxu0
    %1481 = vdwg.mxu0
    %v1482 = vmax.f32 %v1468, 0.0
    %v1483 = vmax.f32 %v1471, 0.0
    %v1484 = vmax.f32 %v1476, 0.0
    %v1485 = vmax.f32 %v1479, 0.0
    %v1486 = vadd.f32 %v1482, %v71
    %v1487 = vadd.f32 %v1483, %v72
    %v1488 = vadd.f32 %v1484, %v73
    %v1489 = vadd.f32 %v1485, %v74
    %v1490 = vmax.f32 %v1486, 0.0
    %v1491 = vmax.f32 %v1487, 0.0
    %v1492 = vmax.f32 %v1488, 0.0
    %v1493 = vmax.f32 %v1489, 0.0
    %1494 = vst [vmem:[#allocation10] sm:$0xff] %v1490
    %1495 = vst [vmem:[#allocation10 + $0x8] sm:$0xff] %v1491
    %1496 = vst [vmem:[#allocation10 + $0x10] sm:$0xff] %v1492
    %1497 = vst [vmem:[#allocation10 + $0x18] sm:$0xff] %v1493
    // Predicated region
    $region34: #{tpu_custom_call.1} parent=1 // pred_check
      _
    $region35: #{tpu_custom_call.1} parent=1 // pred_check_branch
      %1499 = sbr.rel (0) target = $region37
    $region36: #{tpu_custom_call.1} parent=1 // pred_region
      %s1501 = ssub.s32 512, 512
      %1502 = vsyncadd [#allocation6], %s1501
      %s1503 = sshll.u32 [#allocation10], 4
      %s1504 = int_to_ptr.vmem [resolvable:$true] %s1503
      %1509 = dma.vmem_to_hbm [thread:$0]  %s1504, 512, %s5, [#allocation6], 128, 128, 8
    $region37: #{tpu_custom_call.1} parent=1 // pred_fallthru
      _
    // Predicated region
    $region38: #{tpu_custom_call.1} parent=1 // pred_check
      _
    $region39: #{tpu_custom_call.1} parent=1 // pred_check_branch
      %1511 = sbr.rel (0) target = $region41
    $region40: #{tpu_custom_call.1} parent=1 // pred_region
      %1512 = dma.done [#allocation6], 512
    $region41: #{tpu_custom_call.1} parent=1 // pred_fallthru
      _
    %1513 = vsyncpa [#allocation5], 1
    %1514 = vsyncpa [#allocation8], 1
    %1515 = vsyncpa [#allocation6], 1

</llo_original>
